<compile_context>
chip_gen: v7x
topology: tpu7x:2x2x1
jax: 0.10.0
libtpu: 0.0.40
codegen_flags: <defaults>
</compile_context>

<pallas_src>
import numpy as np
import jax
import jax.numpy as jnp
from jax.experimental import pallas as pl
from jax.experimental.pallas import tpu as pltpu

# ---------------- configuration (small, consistent with the module) ----------
N_NODES = 16
HIDDEN = 32
NUM_HEADS = 4
HEAD_DIM = HIDDEN // NUM_HEADS
NUM_LAYERS = 2
LN_EPS = 1e-5
NEG_SLOPE = 0.2      # PyG GATConv default leaky-relu slope
NEG_INF = -1e30

HN = NUM_HEADS * N_NODES          # 64 lane-dense "head x source-node" axis

# ---- consts slab ([_CONST_ROWS, HN] f32) row offsets -------------------------
_ROW_ONES = 0                      # [64,64] block-diagonal ones (per-head softmax sums)
_ROW_HMASK = _ROW_ONES + HN        # [64,32] expanded head mask (head concat)
_ROW_EYE = _ROW_HMASK + HN         # [16,64] tiled identity (src-term diagonal extraction)
_ROW_MASK = _ROW_EYE + N_NODES     # [16,64] additive adjacency mask, tiled per head
_ROW_VEC = _ROW_MASK + N_NODES     # [8,32]  in_b, out_b, (bias,gamma,beta) per layer
_CONST_ROWS = _ROW_VEC + 2 + 3 * NUM_LAYERS            # 168

# ---- wstack slab ([_WSTACK_ROWS, _WAUG_COLS] bf16) row offsets ---------------
_ROW_INW = NUM_LAYERS * HIDDEN     # input_proj weight
_ROW_OUTW = _ROW_INW + HIDDEN      # output_proj weight
_WSTACK_ROWS = _ROW_OUTW + HIDDEN                      # 128
_WAUG_COLS = 2 * HN + HIDDEN                           # 160 = dst(64) | src(64) | W(32)


# ---------------- fused Pallas kernel -----------------------------------------
def _graph_encoder_kernel(x_ref, w_ref, c_ref, o_ref):
    # constants / params (static, aligned slices of the two packed slabs)
    ones_blk = c_ref[_ROW_ONES:_ROW_ONES + HN, :]                 # [64,64]
    hmask_e = c_ref[_ROW_HMASK:_ROW_HMASK + HN, 0:HIDDEN]         # [64,32]
    tile_eye = c_ref[_ROW_EYE:_ROW_EYE + N_NODES, :]              # [16,64]
    mask_t = c_ref[_ROW_MASK:_ROW_MASK + N_NODES, :]              # [16,64]
    in_b = c_ref[_ROW_VEC + 0:_ROW_VEC + 1, 0:HIDDEN]             # [1,32]
    out_b = c_ref[_ROW_VEC + 1:_ROW_VEC + 2, 0:HIDDEN]            # [1,32]

    in_w = w_ref[_ROW_INW:_ROW_INW + HIDDEN, 0:HIDDEN]            # [32,32] bf16
    out_w = w_ref[_ROW_OUTW:_ROW_OUTW + HIDDEN, 0:HIDDEN]         # [32,32] bf16

    # ---- input_proj (bf16 MXU operands, f32 accumulate) ----------------------
    x = jnp.dot(x_ref[...].astype(jnp.bfloat16), in_w,
                preferred_element_type=jnp.float32) + in_b        # [16,32] f32

    # ---- GAT layers (statically unrolled; x stays VMEM/vreg resident) --------
    for l in range(NUM_LAYERS):
        w_aug = w_ref[l * HIDDEN:(l + 1) * HIDDEN, :]             # [32,160] bf16
        # one fused matmul: [dst_term(64) | src_rep(64) | z(32)]
        zz = jnp.dot(x.astype(jnp.bfloat16), w_aug,
                     preferred_element_type=jnp.float32)          # [16,160]
        dst_term = zz[:, 0:HN]                                    # dst_term[i,h*N+j] = e_dst[i,h]
        src_rep = zz[:, HN:2 * HN]                                # src_rep[i,h*N+j]  = e_src[i,h]
        z = zz[:, 2 * HN:2 * HN + HIDDEN]                         # [16,32]

        # src term: diagonal extraction -> broadcast row (src_row[h*N+j] = e_src[j,h])
        src_row = jnp.sum(src_rep * tile_eye, axis=0, keepdims=True)   # [1,64]

        # lane-dense scores [16,64]: LeakyReLU then additive edge mask
        s = dst_term + src_row
        s = jnp.maximum(s, NEG_SLOPE * s)                         # LeakyReLU(0.2)
        s = s + mask_t

        # softmax over source nodes j per (dst i, head h); whole-row max is exact
        m = jnp.max(s, axis=-1, keepdims=True)                    # [16,1]
        p = jnp.exp(s - m)                                        # masked entries -> 0
        denom = jnp.dot(p, ones_blk, preferred_element_type=jnp.float32)   # per-head sums, broadcast
        alpha = p * pl.reciprocal(denom, approx=True)             # [16,64]

        # aggregation + head concat as one MXU contraction (mask folded into V)
        v = jnp.concatenate([z] * NUM_HEADS, axis=0) * hmask_e    # [64,32]
        gat = jnp.dot(alpha.astype(jnp.bfloat16), v.astype(jnp.bfloat16),
                      preferred_element_type=jnp.float32)         # [16,32]
        gat = gat + c_ref[_ROW_VEC + 2 + 3 * l:_ROW_VEC + 3 + 3 * l, 0:HIDDEN]

        # residual (Identity) + LayerNorm (f32)
        y = gat + x
        mu = jnp.mean(y, axis=-1, keepdims=True)
        var = jnp.mean((y - mu) ** 2, axis=-1, keepdims=True)
        y = (y - mu) * jax.lax.rsqrt(var + LN_EPS)
        x = (y * c_ref[_ROW_VEC + 3 + 3 * l:_ROW_VEC + 4 + 3 * l, 0:HIDDEN]
             + c_ref[_ROW_VEC + 4 + 3 * l:_ROW_VEC + 5 + 3 * l, 0:HIDDEN])

    # ---- global mean pool (single graph) + output_proj ------------------------
    pooled = jnp.mean(x, axis=0, keepdims=True)                   # [1,32]
    o_ref[...] = jnp.dot(pooled.astype(jnp.bfloat16), out_w,
                         preferred_element_type=jnp.float32) + out_b


# ---------------- ONE-TIME host-side packing (pure numpy, outside the jit) ----
def prepare_inputs(params, adj):
    f32 = np.float32
    _np = lambda a: np.asarray(a, dtype=f32)

    head_of_col = np.arange(HN) // N_NODES                         # [64]
    node_of_col = np.arange(HN) % N_NODES                          # [64]
    R = (head_of_col[None, :] == np.arange(NUM_HEADS)[:, None]).astype(f32)        # [4,64]
    ones_blk = (head_of_col[:, None] == head_of_col[None, :]).astype(f32)          # [64,64]
    tile_eye = (node_of_col[None, :] == np.arange(N_NODES)[:, None]).astype(f32)   # [16,64]
    hmask_exp = ((np.arange(HIDDEN)[None, :] // HEAD_DIM)
                 == head_of_col[:, None]).astype(f32)                               # [64,32]

    mask_add = np.where(_np(adj) > 0, 0.0, NEG_INF).astype(f32)    # [16,16]
    mask_tiled = np.tile(mask_add, (1, NUM_HEADS))                 # [16,64]

    # ---- wstack slab (bf16): augmented per-layer weights + projections --------
    wstack = np.zeros((_WSTACK_ROWS, _WAUG_COLS), f32)
    for l, lyr in enumerate(params["layers"]):
        W = _np(lyr["w"])                                          # [32,32]
        a_src, a_dst = _np(lyr["a_src"]), _np(lyr["a_dst"])        # [4,8]
        Asrc_blk = np.zeros((HIDDEN, NUM_HEADS), f32)
        Adst_blk = np.zeros((HIDDEN, NUM_HEADS), f32)
        for h in range(NUM_HEADS):
            Asrc_blk[h * HEAD_DIM:(h + 1) * HEAD_DIM, h] = a_src[h]
            Adst_blk[h * HEAD_DIM:(h + 1) * HEAD_DIM, h] = a_dst[h]
        # W_aug = [ (W@Adst)@R | (W@Asrc)@R | W ]  ->  [32, 160]
        wstack[l * HIDDEN:(l + 1) * HIDDEN, :] = np.concatenate(
            [(W @ Adst_blk) @ R, (W @ Asrc_blk) @ R, W], axis=1)
    wstack[_ROW_INW:_ROW_INW + HIDDEN, 0:HIDDEN] = _np(params["in_w"])
    wstack[_ROW_OUTW:_ROW_OUTW + HIDDEN, 0:HIDDEN] = _np(params["out_w"])

    # ---- consts slab (f32) -----------------------------------------------------
    consts = np.zeros((_CONST_ROWS, HN), f32)
    consts[_ROW_ONES:_ROW_ONES + HN, :] = ones_blk
    consts[_ROW_HMASK:_ROW_HMASK + HN, 0:HIDDEN] = hmask_exp
    consts[_ROW_EYE:_ROW_EYE + N_NODES, :] = tile_eye
    consts[_ROW_MASK:_ROW_MASK + N_NODES, :] = mask_tiled
    consts[_ROW_VEC + 0, 0:HIDDEN] = _np(params["in_b"]).reshape(-1)
    consts[_ROW_VEC + 1, 0:HIDDEN] = _np(params["out_b"]).reshape(-1)
    for l, lyr in enumerate(params["layers"]):
        consts[_ROW_VEC + 2 + 3 * l, 0:HIDDEN] = _np(lyr["bias"]).reshape(-1)
        consts[_ROW_VEC + 3 + 3 * l, 0:HIDDEN] = _np(lyr["gamma"]).reshape(-1)
        consts[_ROW_VEC + 4 + 3 * l, 0:HIDDEN] = _np(lyr["beta"]).reshape(-1)

    return (jnp.asarray(wstack).astype(jnp.bfloat16), jnp.asarray(consts))


# ---------------- GraphEncoder forward (single, grid-less pallas_call) --------
@jax.jit
def graph_encoder_forward(x, wstack, consts):
    vmem = pl.BlockSpec(memory_space=pltpu.MemorySpace.VMEM)
    return pl.pallas_call(
        _graph_encoder_kernel,
        out_shape=jax.ShapeDtypeStruct((1, HIDDEN), jnp.float32),
        in_specs=[vmem, vmem, vmem],
        out_specs=vmem,
    )(x, wstack, consts)


# ---------------- pure-JAX reference (per-head loop) ---------------------------
def _reference_forward(params, x, adj):
    x = x @ params["in_w"] + params["in_b"]
    for lyr in params["layers"]:
        z = x @ lyr["w"]
        heads = []
        for h in range(NUM_HEADS):
            zh = z[:, h * HEAD_DIM:(h + 1) * HEAD_DIM]
            e_src = zh @ lyr["a_src"][h]
            e_dst = zh @ lyr["a_dst"][h]
            s = e_dst[:, None] + e_src[None, :]
            s = jnp.where(s > 0, s, NEG_SLOPE * s)
            s = jnp.where(adj > 0, s, NEG_INF)
            a = jax.nn.softmax(s, axis=-1)
            heads.append(a @ zh)
        gat = jnp.concatenate(heads, axis=-1) + lyr["bias"]
        y = gat + x
        mu = y.mean(-1, keepdims=True)
        var = ((y - mu) ** 2).mean(-1, keepdims=True)
        y = (y - mu) * jax.lax.rsqrt(var + LN_EPS)
        x = y * lyr["gamma"] + lyr["beta"]
    pooled = x.mean(0, keepdims=True)
    return pooled @ params["out_w"] + params["out_b"]


# ---------------- deterministic parameter / input construction -----------------
def make_params(key):
    ks = jax.random.split(key, 4 + NUM_LAYERS * 3)
    scale = 0.1
    params = {
        "in_w": scale * jax.random.normal(ks[0], (HIDDEN, HIDDEN), jnp.float32),
        "in_b": scale * jax.random.normal(ks[1], (1, HIDDEN), jnp.float32),
        "out_w": scale * jax.random.normal(ks[2], (HIDDEN, HIDDEN), jnp.float32),
        "out_b": scale * jax.random.normal(ks[3], (1, HIDDEN), jnp.float32),
        "layers": [],
    }
    for l in range(NUM_LAYERS):
        k0, k1, k2 = ks[4 + 3 * l], ks[5 + 3 * l], ks[6 + 3 * l]
        params["layers"].append(
            {
                "w": scale * jax.random.normal(k0, (HIDDEN, HIDDEN), jnp.float32),
                "a_src": scale * jax.random.normal(k1, (NUM_HEADS, HEAD_DIM), jnp.float32),
                "a_dst": scale * jax.random.normal(k2, (NUM_HEADS, HEAD_DIM), jnp.float32),
                "bias": jnp.zeros((1, HIDDEN), jnp.float32),
                "gamma": jnp.ones((1, HIDDEN), jnp.float32),
                "beta": jnp.zeros((1, HIDDEN), jnp.float32),
            }
        )
    return params


def make_graph(key):
    # deterministic node features + ring graph with skip connections
    x = jax.random.normal(key, (N_NODES, HIDDEN), jnp.float32)
    src, dst = [], []
    for i in range(N_NODES):
        for off in (1, 2):
            src.append(i); dst.append((i + off) % N_NODES)
            src.append((i + off) % N_NODES); dst.append(i)
    src = jnp.asarray(src, jnp.int32)
    dst = jnp.asarray(dst, jnp.int32)
    edge_index = jnp.stack([src, dst], axis=0)                        # [2, E]
    adj = jnp.zeros((N_NODES, N_NODES), jnp.float32)
    adj = adj.at[dst, src].set(1.0)                                   # adj[target, source]
    adj = adj.at[jnp.arange(N_NODES), jnp.arange(N_NODES)].set(1.0)   # self-loops (GATConv default)
    return x, edge_index, adj


if __name__ == "__main__":
    key = jax.random.PRNGKey(0)
    k_param, k_graph = jax.random.split(key)
    params = make_params(k_param)
    x, edge_index, adj = make_graph(k_graph)

    # one-time host-side packing (hoisted out of the per-call jit)
    wstack, consts = prepare_inputs(params, adj)

    out = jax.block_until_ready(graph_encoder_forward(x, wstack, consts))
    assert out.shape == (1, HIDDEN)
    assert bool(jnp.all(jnp.isfinite(out)))

    ref = _reference_forward(params, x, adj)
    max_err = float(jnp.max(jnp.abs(out - ref)))
    assert bool(jnp.allclose(out, ref, atol=2e-2, rtol=2e-2)), max_err

    print("KERNEL_OK")
</pallas_src>

<mosaic_0001>
module attributes {stable_mosaic.version = 11 : i64} {
  func.func @_graph_encoder_kernel(%arg0: memref<16x32xf32, #tpu.memory_space<vmem>>, %arg1: memref<128x160xbf16, #tpu.memory_space<vmem>>, %arg2: memref<168x64xf32, #tpu.memory_space<vmem>>, %arg3: memref<1x32xf32, #tpu.memory_space<vmem>>) attributes {dimension_semantics = [], scalar_prefetch = 0 : i64, scratch_operands = 0 : i64, tpu.core_type = #tpu.core_type<tc>} {
    %c0 = arith.constant 0 : index
    %c0_0 = arith.constant 0 : index
    %0 = vector.load %arg2[%c0, %c0_0] : memref<168x64xf32, #tpu.memory_space<vmem>>, vector<64x64xf32>
    %c64 = arith.constant 64 : index
    %c0_1 = arith.constant 0 : index
    %1 = vector.load %arg2[%c64, %c0_1] : memref<168x64xf32, #tpu.memory_space<vmem>>, vector<64x32xf32>
    %c128 = arith.constant 128 : index
    %c0_2 = arith.constant 0 : index
    %2 = vector.load %arg2[%c128, %c0_2] : memref<168x64xf32, #tpu.memory_space<vmem>>, vector<16x64xf32>
    %c144 = arith.constant 144 : index
    %c0_3 = arith.constant 0 : index
    %3 = vector.load %arg2[%c144, %c0_3] : memref<168x64xf32, #tpu.memory_space<vmem>>, vector<16x64xf32>
    %c160 = arith.constant 160 : index
    %c0_4 = arith.constant 0 : index
    %4 = vector.load %arg2[%c160, %c0_4] : memref<168x64xf32, #tpu.memory_space<vmem>>, vector<1x32xf32>
    %c161 = arith.constant 161 : index
    %c0_5 = arith.constant 0 : index
    %5 = vector.load %arg2[%c161, %c0_5] : memref<168x64xf32, #tpu.memory_space<vmem>>, vector<1x32xf32>
    %c64_6 = arith.constant 64 : index
    %c0_7 = arith.constant 0 : index
    %6 = vector.load %arg1[%c64_6, %c0_7] : memref<128x160xbf16, #tpu.memory_space<vmem>>, vector<32x32xbf16>
    %c96 = arith.constant 96 : index
    %c0_8 = arith.constant 0 : index
    %7 = vector.load %arg1[%c96, %c0_8] : memref<128x160xbf16, #tpu.memory_space<vmem>>, vector<32x32xbf16>
    %c0_9 = arith.constant 0 : index
    %c0_10 = arith.constant 0 : index
    %8 = vector.load %arg0[%c0_9, %c0_10] : memref<16x32xf32, #tpu.memory_space<vmem>>, vector<16x32xf32>
    %9 = arith.truncf %8 : vector<16x32xf32> to vector<16x32xbf16>
    %cst = arith.constant dense<0.000000e+00> : vector<16x32xf32>
    %10 = tpu.matmul %9, %6, %cst {dimension_numbers = #tpu.dot_dimension_numbers<[1], [0], [0], [1], [0, 0, 1, 1], [], []>} : vector<16x32xbf16>, vector<32x32xbf16>, vector<16x32xf32> -> vector<16x32xf32>
    %11 = vector.broadcast %4 : vector<1x32xf32> to vector<16x32xf32>
    %12 = arith.addf %10, %11 : vector<16x32xf32>
    %c0_11 = arith.constant 0 : index
    %c0_12 = arith.constant 0 : index
    %13 = vector.load %arg1[%c0_11, %c0_12] : memref<128x160xbf16, #tpu.memory_space<vmem>>, vector<32x160xbf16>
    %14 = arith.truncf %12 : vector<16x32xf32> to vector<16x32xbf16>
    %cst_13 = arith.constant dense<0.000000e+00> : vector<16x160xf32>
    %15 = tpu.matmul %14, %13, %cst_13 {dimension_numbers = #tpu.dot_dimension_numbers<[1], [0], [0], [1], [0, 0, 1, 1], [], []>} : vector<16x32xbf16>, vector<32x160xbf16>, vector<16x160xf32> -> vector<16x160xf32>
    %16 = vector.extract_strided_slice %15 {offsets = [0, 0], sizes = [16, 64], strides = [1, 1]} : vector<16x160xf32> to vector<16x64xf32>
    %17 = vector.extract_strided_slice %15 {offsets = [0, 64], sizes = [16, 64], strides = [1, 1]} : vector<16x160xf32> to vector<16x64xf32>
    %18 = vector.extract_strided_slice %15 {offsets = [0, 128], sizes = [16, 32], strides = [1, 1]} : vector<16x160xf32> to vector<16x32xf32>
    %19 = arith.mulf %17, %2 : vector<16x64xf32>
    %cst_14 = arith.constant dense<0.000000e+00> : vector<64xf32>
    %20 = vector.multi_reduction <add>, %19, %cst_14 [0] : vector<16x64xf32> to vector<64xf32>
    %21 = vector.shape_cast %20 : vector<64xf32> to vector<1x64xf32>
    %22 = vector.broadcast %21 : vector<1x64xf32> to vector<16x64xf32>
    %23 = arith.addf %16, %22 : vector<16x64xf32>
    %cst_15 = arith.constant 2.000000e-01 : f32
    %24 = vector.broadcast %cst_15 : f32 to vector<16x64xf32>
    %25 = arith.mulf %24, %23 : vector<16x64xf32>
    %26 = arith.maximumf %23, %25 : vector<16x64xf32>
    %27 = arith.addf %26, %3 : vector<16x64xf32>
    %cst_16 = arith.constant dense<0xFF800000> : vector<16xf32>
    %28 = vector.multi_reduction <maximumf>, %27, %cst_16 [1] : vector<16x64xf32> to vector<16xf32>
    %29 = vector.shape_cast %28 : vector<16xf32> to vector<16x1xf32>
    %30 = vector.broadcast %29 : vector<16x1xf32> to vector<16x64xf32>
    %31 = arith.subf %27, %30 : vector<16x64xf32>
    %32 = math.exp %31 : vector<16x64xf32>
    %cst_17 = arith.constant dense<0.000000e+00> : vector<16x64xf32>
    %33 = tpu.matmul %32, %0, %cst_17 {dimension_numbers = #tpu.dot_dimension_numbers<[1], [0], [0], [1], [0, 0, 1, 1], [], []>} : vector<16x64xf32>, vector<64x64xf32>, vector<16x64xf32> -> vector<16x64xf32>
    %34 = tpu.reciprocal %33 {approx = true} : vector<16x64xf32> -> vector<16x64xf32>
    %35 = arith.mulf %32, %34 : vector<16x64xf32>
    %36 = tpu.concatenate %18, %18, %18, %18 in 0 : vector<16x32xf32>, vector<16x32xf32>, vector<16x32xf32>, vector<16x32xf32> -> vector<64x32xf32>
    %37 = arith.mulf %36, %1 : vector<64x32xf32>
    %38 = arith.truncf %35 : vector<16x64xf32> to vector<16x64xbf16>
    %39 = arith.truncf %37 : vector<64x32xf32> to vector<64x32xbf16>
    %cst_18 = arith.constant dense<0.000000e+00> : vector<16x32xf32>
    %40 = tpu.matmul %38, %39, %cst_18 {dimension_numbers = #tpu.dot_dimension_numbers<[1], [0], [0], [1], [0, 0, 1, 1], [], []>} : vector<16x64xbf16>, vector<64x32xbf16>, vector<16x32xf32> -> vector<16x32xf32>
    %c162 = arith.constant 162 : index
    %c0_19 = arith.constant 0 : index
    %41 = vector.load %arg2[%c162, %c0_19] : memref<168x64xf32, #tpu.memory_space<vmem>>, vector<1x32xf32>
    %42 = vector.broadcast %41 : vector<1x32xf32> to vector<16x32xf32>
    %43 = arith.addf %40, %42 : vector<16x32xf32>
    %44 = arith.addf %43, %12 : vector<16x32xf32>
    %cst_20 = arith.constant dense<0.000000e+00> : vector<16xf32>
    %45 = vector.multi_reduction <add>, %44, %cst_20 [1] : vector<16x32xf32> to vector<16xf32>
    %46 = vector.shape_cast %45 : vector<16xf32> to vector<16x1xf32>
    %cst_21 = arith.constant 3.200000e+01 : f32
    %47 = vector.broadcast %cst_21 : f32 to vector<16x1xf32>
    %48 = arith.divf %46, %47 : vector<16x1xf32>
    %49 = vector.broadcast %48 : vector<16x1xf32> to vector<16x32xf32>
    %50 = arith.subf %44, %49 : vector<16x32xf32>
    %51 = arith.mulf %50, %50 : vector<16x32xf32>
    %cst_22 = arith.constant dense<0.000000e+00> : vector<16xf32>
    %52 = vector.multi_reduction <add>, %51, %cst_22 [1] : vector<16x32xf32> to vector<16xf32>
    %53 = vector.shape_cast %52 : vector<16xf32> to vector<16x1xf32>
    %cst_23 = arith.constant 3.200000e+01 : f32
    %54 = vector.broadcast %cst_23 : f32 to vector<16x1xf32>
    %55 = arith.divf %53, %54 : vector<16x1xf32>
    %56 = vector.broadcast %48 : vector<16x1xf32> to vector<16x32xf32>
    %57 = arith.subf %44, %56 : vector<16x32xf32>
    %cst_24 = arith.constant 9.99999974E-6 : f32
    %58 = vector.broadcast %cst_24 : f32 to vector<16x1xf32>
    %59 = arith.addf %55, %58 : vector<16x1xf32>
    %60 = math.rsqrt %59 : vector<16x1xf32>
    %61 = vector.broadcast %60 : vector<16x1xf32> to vector<16x32xf32>
    %62 = arith.mulf %57, %61 : vector<16x32xf32>
    %c163 = arith.constant 163 : index
    %c0_25 = arith.constant 0 : index
    %63 = vector.load %arg2[%c163, %c0_25] : memref<168x64xf32, #tpu.memory_space<vmem>>, vector<1x32xf32>
    %64 = vector.broadcast %63 : vector<1x32xf32> to vector<16x32xf32>
    %65 = arith.mulf %62, %64 : vector<16x32xf32>
    %c164 = arith.constant 164 : index
    %c0_26 = arith.constant 0 : index
    %66 = vector.load %arg2[%c164, %c0_26] : memref<168x64xf32, #tpu.memory_space<vmem>>, vector<1x32xf32>
    %67 = vector.broadcast %66 : vector<1x32xf32> to vector<16x32xf32>
    %68 = arith.addf %65, %67 : vector<16x32xf32>
    %c32 = arith.constant 32 : index
    %c0_27 = arith.constant 0 : index
    %69 = vector.load %arg1[%c32, %c0_27] : memref<128x160xbf16, #tpu.memory_space<vmem>>, vector<32x160xbf16>
    %70 = arith.truncf %68 : vector<16x32xf32> to vector<16x32xbf16>
    %cst_28 = arith.constant dense<0.000000e+00> : vector<16x160xf32>
    %71 = tpu.matmul %70, %69, %cst_28 {dimension_numbers = #tpu.dot_dimension_numbers<[1], [0], [0], [1], [0, 0, 1, 1], [], []>} : vector<16x32xbf16>, vector<32x160xbf16>, vector<16x160xf32> -> vector<16x160xf32>
    %72 = vector.extract_strided_slice %71 {offsets = [0, 0], sizes = [16, 64], strides = [1, 1]} : vector<16x160xf32> to vector<16x64xf32>
    %73 = vector.extract_strided_slice %71 {offsets = [0, 64], sizes = [16, 64], strides = [1, 1]} : vector<16x160xf32> to vector<16x64xf32>
    %74 = vector.extract_strided_slice %71 {offsets = [0, 128], sizes = [16, 32], strides = [1, 1]} : vector<16x160xf32> to vector<16x32xf32>
    %75 = arith.mulf %73, %2 : vector<16x64xf32>
    %cst_29 = arith.constant dense<0.000000e+00> : vector<64xf32>
    %76 = vector.multi_reduction <add>, %75, %cst_29 [0] : vector<16x64xf32> to vector<64xf32>
    %77 = vector.shape_cast %76 : vector<64xf32> to vector<1x64xf32>
    %78 = vector.broadcast %77 : vector<1x64xf32> to vector<16x64xf32>
    %79 = arith.addf %72, %78 : vector<16x64xf32>
    %cst_30 = arith.constant 2.000000e-01 : f32
    %80 = vector.broadcast %cst_30 : f32 to vector<16x64xf32>
    %81 = arith.mulf %80, %79 : vector<16x64xf32>
    %82 = arith.maximumf %79, %81 : vector<16x64xf32>
    %83 = arith.addf %82, %3 : vector<16x64xf32>
    %cst_31 = arith.constant dense<0xFF800000> : vector<16xf32>
    %84 = vector.multi_reduction <maximumf>, %83, %cst_31 [1] : vector<16x64xf32> to vector<16xf32>
    %85 = vector.shape_cast %84 : vector<16xf32> to vector<16x1xf32>
    %86 = vector.broadcast %85 : vector<16x1xf32> to vector<16x64xf32>
    %87 = arith.subf %83, %86 : vector<16x64xf32>
    %88 = math.exp %87 : vector<16x64xf32>
    %cst_32 = arith.constant dense<0.000000e+00> : vector<16x64xf32>
    %89 = tpu.matmul %88, %0, %cst_32 {dimension_numbers = #tpu.dot_dimension_numbers<[1], [0], [0], [1], [0, 0, 1, 1], [], []>} : vector<16x64xf32>, vector<64x64xf32>, vector<16x64xf32> -> vector<16x64xf32>
    %90 = tpu.reciprocal %89 {approx = true} : vector<16x64xf32> -> vector<16x64xf32>
    %91 = arith.mulf %88, %90 : vector<16x64xf32>
    %92 = tpu.concatenate %74, %74, %74, %74 in 0 : vector<16x32xf32>, vector<16x32xf32>, vector<16x32xf32>, vector<16x32xf32> -> vector<64x32xf32>
    %93 = arith.mulf %92, %1 : vector<64x32xf32>
    %94 = arith.truncf %91 : vector<16x64xf32> to vector<16x64xbf16>
    %95 = arith.truncf %93 : vector<64x32xf32> to vector<64x32xbf16>
    %cst_33 = arith.constant dense<0.000000e+00> : vector<16x32xf32>
    %96 = tpu.matmul %94, %95, %cst_33 {dimension_numbers = #tpu.dot_dimension_numbers<[1], [0], [0], [1], [0, 0, 1, 1], [], []>} : vector<16x64xbf16>, vector<64x32xbf16>, vector<16x32xf32> -> vector<16x32xf32>
    %c165 = arith.constant 165 : index
    %c0_34 = arith.constant 0 : index
    %97 = vector.load %arg2[%c165, %c0_34] : memref<168x64xf32, #tpu.memory_space<vmem>>, vector<1x32xf32>
    %98 = vector.broadcast %97 : vector<1x32xf32> to vector<16x32xf32>
    %99 = arith.addf %96, %98 : vector<16x32xf32>
    %100 = arith.addf %99, %68 : vector<16x32xf32>
    %cst_35 = arith.constant dense<0.000000e+00> : vector<16xf32>
    %101 = vector.multi_reduction <add>, %100, %cst_35 [1] : vector<16x32xf32> to vector<16xf32>
    %102 = vector.shape_cast %101 : vector<16xf32> to vector<16x1xf32>
    %cst_36 = arith.constant 3.200000e+01 : f32
    %103 = vector.broadcast %cst_36 : f32 to vector<16x1xf32>
    %104 = arith.divf %102, %103 : vector<16x1xf32>
    %105 = vector.broadcast %104 : vector<16x1xf32> to vector<16x32xf32>
    %106 = arith.subf %100, %105 : vector<16x32xf32>
    %107 = arith.mulf %106, %106 : vector<16x32xf32>
    %cst_37 = arith.constant dense<0.000000e+00> : vector<16xf32>
    %108 = vector.multi_reduction <add>, %107, %cst_37 [1] : vector<16x32xf32> to vector<16xf32>
    %109 = vector.shape_cast %108 : vector<16xf32> to vector<16x1xf32>
    %cst_38 = arith.constant 3.200000e+01 : f32
    %110 = vector.broadcast %cst_38 : f32 to vector<16x1xf32>
    %111 = arith.divf %109, %110 : vector<16x1xf32>
    %112 = vector.broadcast %104 : vector<16x1xf32> to vector<16x32xf32>
    %113 = arith.subf %100, %112 : vector<16x32xf32>
    %cst_39 = arith.constant 9.99999974E-6 : f32
    %114 = vector.broadcast %cst_39 : f32 to vector<16x1xf32>
    %115 = arith.addf %111, %114 : vector<16x1xf32>
    %116 = math.rsqrt %115 : vector<16x1xf32>
    %117 = vector.broadcast %116 : vector<16x1xf32> to vector<16x32xf32>
    %118 = arith.mulf %113, %117 : vector<16x32xf32>
    %c166 = arith.constant 166 : index
    %c0_40 = arith.constant 0 : index
    %119 = vector.load %arg2[%c166, %c0_40] : memref<168x64xf32, #tpu.memory_space<vmem>>, vector<1x32xf32>
    %120 = vector.broadcast %119 : vector<1x32xf32> to vector<16x32xf32>
    %121 = arith.mulf %118, %120 : vector<16x32xf32>
    %c167 = arith.constant 167 : index
    %c0_41 = arith.constant 0 : index
    %122 = vector.load %arg2[%c167, %c0_41] : memref<168x64xf32, #tpu.memory_space<vmem>>, vector<1x32xf32>
    %123 = vector.broadcast %122 : vector<1x32xf32> to vector<16x32xf32>
    %124 = arith.addf %121, %123 : vector<16x32xf32>
    %cst_42 = arith.constant dense<0.000000e+00> : vector<32xf32>
    %125 = vector.multi_reduction <add>, %124, %cst_42 [0] : vector<16x32xf32> to vector<32xf32>
    %126 = vector.shape_cast %125 : vector<32xf32> to vector<1x32xf32>
    %cst_43 = arith.constant 1.600000e+01 : f32
    %127 = vector.broadcast %cst_43 : f32 to vector<1x32xf32>
    %128 = arith.divf %126, %127 : vector<1x32xf32>
    %129 = arith.truncf %128 : vector<1x32xf32> to vector<1x32xbf16>
    %cst_44 = arith.constant dense<0.000000e+00> : vector<1x32xf32>
    %130 = tpu.matmul %129, %7, %cst_44 {dimension_numbers = #tpu.dot_dimension_numbers<[1], [0], [0], [1], [0, 0, 1, 1], [], []>} : vector<1x32xbf16>, vector<32x32xbf16>, vector<1x32xf32> -> vector<1x32xf32>
    %131 = arith.addf %130, %5 : vector<1x32xf32>
    %c0_45 = arith.constant 0 : index
    %c0_46 = arith.constant 0 : index
    %132 = vector.load %arg3[%c0_45, %c0_46] : memref<1x32xf32, #tpu.memory_space<vmem>>, vector<1x32xf32>
    tpu.vector_store %arg3[%c0_45, %c0_46], %131 {strides = array<i32>} : memref<1x32xf32, #tpu.memory_space<vmem>>, vector<1x32xf32>,
    return
  }
}

</mosaic_0001>

<llo_original>
// kernel: graph_encoder_forward.1
$region0: #{graph_encoder_forward.1}
  #allocation0 [shape = 'u32[]', space=smem, size = 0x4, offset = 0x4, fixed_abs, tag = 'smem constant byte address 0x4 - core index']
  #allocation1 [shape = 'u32[144,128]{1,0:T(1,128)}', space=vmem, size = 0x12000, scoped, tag = 'internal scratch']
  %s0 = inlined_call_operand.vmem [shape: f32[16,32], index: 0, kind: input, shape index: {}]
  %s1 = inlined_call_operand.vmem [shape: bf16[128,160], index: 1, kind: input, shape index: {}]
  %s2 = inlined_call_operand.vmem [shape: f32[168,64], index: 2, kind: input, shape index: {}]
  %s3 = inlined_call_operand.hbm [shape: f32[1,32], index: 3, kind: output, shape index: {}]
  %s4 = sld [smem:[#allocation0]]
  $region22: #{graph_encoder_forward.1} parent=0
    _
  %s6 = ssub.s32 1, %s4
  %s7 = scalar_select 0, %s6, %s4
  $region1: #{graph_encoder_forward.1} parent=0
    #allocation2 [shape = 'u8[512]{0}', space=vmem, size = 0x400, scoped, tag = 'output window, operand 0, single buffered']
    #allocation3 [shape = 's32[1]{0}', space=sflag, size = 0x4, scoped, tag = 'scoped memory for graph_encoder_forward.1']
    %8 = vsyncpa [#allocation3], 0
    // Predicated region
    $region2: #{graph_encoder_forward.1} parent=1 // pred_check
      _
    $region3: #{graph_encoder_forward.1} parent=1 // pred_check_branch
      %10 = sbr.rel (0) target = $region5
    $region4: #{graph_encoder_forward.1} parent=1 // pred_region
      _
    $region5: #{graph_encoder_forward.1} parent=1 // pred_fallthru
      _
    // Predicated region
    $region6: #{graph_encoder_forward.1} parent=1 // pred_check
      _
    $region7: #{graph_encoder_forward.1} parent=1 // pred_check_branch
      %12 = sbr.rel (0) target = $region9
    $region8: #{graph_encoder_forward.1} parent=1 // pred_region
      _
    $region9: #{graph_encoder_forward.1} parent=1 // pred_fallthru
      _
    // Predicated region
    $region10: #{graph_encoder_forward.1} parent=1 // pred_check
      _
    $region11: #{graph_encoder_forward.1} parent=1 // pred_check_branch
      %14 = sbr.rel (0) target = $region13
    $region12: #{graph_encoder_forward.1} parent=1 // pred_region
      _
    $region13: #{graph_encoder_forward.1} parent=1 // pred_fallthru
      _
    %v16 = vld [vmem:[%s2] sm:$0xff]
    %v17 = vld [vmem:[%s2 + $0x8] sm:$0xff]
    %v18 = vld [vmem:[%s2 + $0x10] sm:$0xff]
    %v19 = vld [vmem:[%s2 + $0x18] sm:$0xff]
    %v20 = vld [vmem:[%s2 + $0x20] sm:$0xff]
    %v21 = vld [vmem:[%s2 + $0x28] sm:$0xff]
    %v22 = vld [vmem:[%s2 + $0x30] sm:$0xff]
    %v23 = vld [vmem:[%s2 + $0x38] sm:$0xff]
    %v24 = vld [vmem:[%s2 + $0x40] sm:$0xff]
    %v25 = vld [vmem:[%s2 + $0x48] sm:$0xff]
    %v26 = vld [vmem:[%s2 + $0x50] sm:$0xff]
    %v27 = vld [vmem:[%s2 + $0x58] sm:$0xff]
    %v28 = vld [vmem:[%s2 + $0x60] sm:$0xff]
    %v29 = vld [vmem:[%s2 + $0x68] sm:$0xff]
    %v30 = vld [vmem:[%s2 + $0x70] sm:$0xff]
    %v31 = vld [vmem:[%s2 + $0x78] sm:$0xff]
    %v32 = vld [vmem:[%s2 + $0x80] sm:$0xff]
    %v33 = vld [vmem:[%s2 + $0x88] sm:$0xff]
    %v34 = vld [vmem:[%s2 + $0x90] sm:$0xff]
    %v35 = vld [vmem:[%s2 + $0x98] sm:$0xff]
    %v36 = vld [vmem:[%s2 + $0xa0] sm:$0x1]
    %v37 = vld [vmem:[%s2 + $0xa1] sm:$0x1]
    %v38 = vld [vmem:[%s1 + $0x40] sm:$0xf]
    %v39 = vld [vmem:[%s1 + $0x48] sm:$0xf]
    %v40 = vld [vmem:[%s1 + $0x50] sm:$0xf]
    %v41 = vld [vmem:[%s1 + $0x58] sm:$0xf]
    %v42 = vld [vmem:[%s1 + $0x60] sm:$0xf]
    %v43 = vld [vmem:[%s1 + $0x68] sm:$0xf]
    %v44 = vld [vmem:[%s1 + $0x70] sm:$0xf]
    %v45 = vld [vmem:[%s1 + $0x78] sm:$0xf]
    %v46 = vld [vmem:[%s0] sm:$0xff]
    %v47 = vld [vmem:[%s0 + $0x8] sm:$0xff]
    %v48 = vpack.c.bf16 %v47, %v46
    %v49 = vlaneseq
    %v50 = vshrl.u32 %v49, 7
    %v51 = vsub.s32 0, %v50
    %v52 = vrot.slane %v36, %v51
    %v57 = vunpack.c.l.b16 %v38
    %v58 = vunpack.c.l.b16 %v39
    %v59 = vunpack.c.l.b16 %v40
    %v60 = vunpack.c.l.b16 %v41
    %v61 = vpack.c.b16 %v58, %v57
    %v62 = vpack.c.b16 %v60, %v59
    %vm65 = vcmask 261120
    %v67 = vsel %vm65, %v48, 0
    %69 = vmatprep.subr.bf16.mxu0 0
    %70 = vmatpush1.bf16.msra.mxu0 %v61
    %71 = vmatprep.subr.bf16.mxu0 0
    %72 = vmatpush1.bf16.msra.mxu0 %v62
    %73 = vmatprep.subr.bf16.mxu0 0
    %74 = vmatpush1.bf16.msra.mxu0 0
    %75 = vmatprep.subr.bf16.mxu0 0
    %76 = vmatpush1.bf16.msra.mxu0 0
    %77 = vmatprep.subr.bf16.mxu0 0
    %78 = vmatpush1.bf16.msra.mxu0 0
    %79 = vmatprep.subr.bf16.mxu0 0
    %80 = vmatpush1.bf16.msra.mxu0 0
    %81 = vmatprep.subr.bf16.mxu0 0
    %82 = vmatpush1.bf16.msra.mxu0 0
    %83 = vmatprep.subr.bf16.mxu0 0
    %84 = vmatpush1.bf16.msra.mxu0 0
    %85 = vmatprep.subr.bf16.mxu0 0
    %86 = vmatpush1.bf16.msra.mxu0 0
    %87 = vmatprep.subr.bf16.mxu0 0
    %88 = vmatpush1.bf16.msra.mxu0 0
    %89 = vmatprep.subr.bf16.mxu0 0
    %90 = vmatpush1.bf16.msra.mxu0 0
    %91 = vmatprep.subr.bf16.mxu0 0
    %92 = vmatpush1.bf16.msra.mxu0 0
    %93 = vmatprep.subr.bf16.mxu0 0
    %94 = vmatpush1.bf16.msra.mxu0 0
    %95 = vmatprep.subr.bf16.mxu0 0
    %96 = vmatpush1.bf16.msra.mxu0 0
    %97 = vmatprep.subr.bf16.mxu0 0
    %98 = vmatpush1.bf16.msra.mxu0 0
    %99 = vmatprep.subr.bf16.mxu0 0
    %100 = vmatpush1.bf16.msra.mxu0 0
    %101 = vmatprep.mubr.bf16.mxu0 0
    %102 = vmatmul.mubr.bf16.gmra.mrb[0].mxu0 %v67
    %v103 = vpop.f32.mrb[0].mxu0
    %v104 = vadd.f32 %v52, %v103
    %v105 = vpop.f32.mrb[0].mxu0
    %v106 = vpop.f32.mrb[0].mxu0
    %v107 = vadd.f32 %v52, %v106
    %v108 = vpop.f32.mrb[0].mxu0
    %109 = vdwg.mxu0
    %v110 = vld [vmem:[%s1] sm:$0xff]
    %v111 = vld [vmem:[%s1 + $0x8] sm:$0xff]
    %v112 = vld [vmem:[%s1 + $0x10] sm:$0xff]
    %v113 = vld [vmem:[%s1 + $0x18] sm:$0xff]
    %v114 = vpack.c.bf16 %v107, %v104
    %v119 = vunpack.c.l.b16 %v110
    %v120 = vunpack.c.h.b16 %v110
    %v121 = vunpack.c.l.b16 %v111
    %v122 = vunpack.c.h.b16 %v111
    %v123 = vunpack.c.l.b16 %v112
    %v124 = vunpack.c.h.b16 %v112
    %v125 = vunpack.c.l.b16 %v113
    %v126 = vunpack.c.h.b16 %v113
    %v127 = vpack.c.b16 %v121, %v119
    %v128 = vpack.c.b16 %v122, %v120
    %v129 = vpack.c.b16 %v125, %v123
    %v130 = vpack.c.b16 %v126, %v124
    %v136 = vsel %vm65, %v114, 0
    %138 = vmatprep.subr.bf16.mxu0 %v128
    %139 = vmatpush1.bf16.msra.mxu0 %v127
    %140 = vmatprep.subr.bf16.mxu0 %v130
    %141 = vmatpush1.bf16.msra.mxu0 %v129
    %142 = vmatprep.subr.bf16.mxu0 0
    %143 = vmatpush1.bf16.msra.mxu0 0
    %144 = vmatprep.subr.bf16.mxu0 0
    %145 = vmatpush1.bf16.msra.mxu0 0
    %146 = vmatprep.subr.bf16.mxu0 0
    %147 = vmatpush1.bf16.msra.mxu0 0
    %148 = vmatprep.subr.bf16.mxu0 0
    %149 = vmatpush1.bf16.msra.mxu0 0
    %150 = vmatprep.subr.bf16.mxu0 0
    %151 = vmatpush1.bf16.msra.mxu0 0
    %152 = vmatprep.subr.bf16.mxu0 0
    %153 = vmatpush1.bf16.msra.mxu0 0
    %154 = vmatprep.subr.bf16.mxu0 0
    %155 = vmatpush1.bf16.msra.mxu0 0
    %156 = vmatprep.subr.bf16.mxu0 0
    %157 = vmatpush1.bf16.msra.mxu0 0
    %158 = vmatprep.subr.bf16.mxu0 0
    %159 = vmatpush1.bf16.msra.mxu0 0
    %160 = vmatprep.subr.bf16.mxu0 0
    %161 = vmatpush1.bf16.msra.mxu0 0
    %162 = vmatprep.subr.bf16.mxu0 0
    %163 = vmatpush1.bf16.msra.mxu0 0
    %164 = vmatprep.subr.bf16.mxu0 0
    %165 = vmatpush1.bf16.msra.mxu0 0
    %166 = vmatprep.subr.bf16.mxu0 0
    %167 = vmatpush1.bf16.msra.mxu0 0
    %168 = vmatprep.subr.bf16.mxu0 0
    %169 = vmatpush1.bf16.msra.mxu0 0
    %170 = vmatprep.mubr.bf16.mxu0 0
    %171 = vmatmul.mubr.bf16.gmra.mrb[0].mxu0 %v136
    %v172 = vpop.f32.mrb[0].mxu0
    %v173 = vadd.f32 0.0, %v172
    %v174 = vpop.f32.mrb[0].mxu0
    %v175 = vadd.f32 0.0, %v174
    %v176 = vpop.f32.mrb[0].mxu0
    %v177 = vadd.f32 0.0, %v176
    %v178 = vpop.f32.mrb[0].mxu0
    %v179 = vadd.f32 0.0, %v178
    %180 = vdwg.mxu0
    %183 = vrot.lane.b32.xlu0 %v32, 64
    %v184 = vpop.permute.xlu0 %183
    %185 = vrot.lane.b32.xlu0 %v33, 64
    %v186 = vpop.permute.xlu0 %185
    %v189 = vmul.f32 %v173, %v184
    %v190 = vmul.f32 %v177, %v186
    %vm191 = vcmask 1048064
    %v192 = vsel %vm191, %v189, 0.0
    %v193 = vsel %vm191, %v190, 0.0
    %v194 = vadd.f32 %v192, %v193
    %v195 = vrot.slane %v194, 4
    %v196 = vadd.f32 %v194, %v195
    %v197 = vrot.slane %v196, 2
    %v198 = vadd.f32 %v196, %v197
    %v199 = vrot.slane %v198, 1
    %v200 = vadd.f32 %v198, %v199
    %202 = vrot.lane.b32.xlu0 %v200, 64
    %v203 = vpop.permute.xlu0 %202
    %v205 = vadd.f32 %v173, %v203
    %v206 = vadd.f32 %v177, %v203
    %v207 = vmul.f32 %v205, 0.2
    %v208 = vmul.f32 %v206, 0.2
    %v209 = vmax.f32 %v205, %v207
    %v210 = vmax.f32 %v206, %v208
    %v211 = vadd.f32 %v209, %v34
    %v212 = vadd.f32 %v210, %v35
    %vm213 = vcmask 523264
    %v214 = vsel %vm213, %v211, -inf
    %215 = vmax.xlane.f32.xlu0 %v214
    %v216 = vpop.xlane.xlu0 %215
    %v217 = vsel %vm213, %v212, -inf
    %218 = vmax.xlane.f32.xlu0 %v217
    %v219 = vpop.xlane.xlu0 %218
    %v220 = vsub.f32 %v211, %v216
    %v221 = vsub.f32 %v212, %v219
    %v222 = vmul.f32 %v220, 1.442695
    %v223 = vpow.pop %v222
    %v224 = vmul.f32 %v221, 1.442695
    %v225 = vpow.pop %v224
    %v227 = vsel %vm213, %v223, 0
    %v230 = vsel %vm213, %v225, 0
    %232 = vmatprep.subr.mxu0 0.0
    %233 = vmatpush1.msra.mxu0 %v16
    %234 = vmatprep.subr.mxu0 0.0
    %235 = vmatpush1.msra.mxu0 %v17
    %236 = vmatprep.subr.mxu0 0.0
    %237 = vmatpush1.msra.mxu0 %v18
    %238 = vmatprep.subr.mxu0 0.0
    %239 = vmatpush1.msra.mxu0 %v19
    %240 = vmatprep.subr.mxu0 0.0
    %241 = vmatpush1.msra.mxu0 %v20
    %242 = vmatprep.subr.mxu0 0.0
    %243 = vmatpush1.msra.mxu0 %v21
    %244 = vmatprep.subr.mxu0 0.0
    %245 = vmatpush1.msra.mxu0 %v22
    %246 = vmatprep.subr.mxu0 0.0
    %247 = vmatpush1.msra.mxu0 %v23
    %248 = vmatprep.subr.mxu0 0.0
    %249 = vmatpush1.msra.mxu0 0.0
    %250 = vmatprep.subr.mxu0 0.0
    %251 = vmatpush1.msra.mxu0 0.0
    %252 = vmatprep.subr.mxu0 0.0
    %253 = vmatpush1.msra.mxu0 0.0
    %254 = vmatprep.subr.mxu0 0.0
    %255 = vmatpush1.msra.mxu0 0.0
    %256 = vmatprep.subr.mxu0 0.0
    %257 = vmatpush1.msra.mxu0 0.0
    %258 = vmatprep.subr.mxu0 0.0
    %259 = vmatpush1.msra.mxu0 0.0
    %260 = vmatprep.subr.mxu0 0.0
    %261 = vmatpush1.msra.mxu0 0.0
    %262 = vmatprep.subr.mxu0 0.0
    %263 = vmatpush1.msra.mxu0 0.0
    %264 = vmatprep.subr.mxu0 0.0
    %265 = vmatpush1.msra.mxu0 0.0
    %266 = vmatprep.subr.mxu0 0.0
    %267 = vmatpush1.msra.mxu0 0.0
    %268 = vmatprep.subr.mxu0 0.0
    %269 = vmatpush1.msra.mxu0 0.0
    %270 = vmatprep.subr.mxu0 0.0
    %271 = vmatpush1.msra.mxu0 0.0
    %272 = vmatprep.subr.mxu0 0.0
    %273 = vmatpush1.msra.mxu0 0.0
    %274 = vmatprep.subr.mxu0 0.0
    %275 = vmatpush1.msra.mxu0 0.0
    %276 = vmatprep.subr.mxu0 0.0
    %277 = vmatpush1.msra.mxu0 0.0
    %278 = vmatprep.subr.mxu0 0.0
    %279 = vmatpush1.msra.mxu0 0.0
    %280 = vmatprep.subr.mxu0 0.0
    %281 = vmatpush1.msra.mxu0 0.0
    %282 = vmatprep.subr.mxu0 0.0
    %283 = vmatpush1.msra.mxu0 0.0
    %284 = vmatprep.subr.mxu0 0.0
    %285 = vmatpush1.msra.mxu0 0.0
    %286 = vmatprep.subr.mxu0 0.0
    %287 = vmatpush1.msra.mxu0 0.0
    %288 = vmatprep.subr.mxu0 0.0
    %289 = vmatpush1.msra.mxu0 0.0
    %290 = vmatprep.subr.mxu0 0.0
    %291 = vmatpush1.msra.mxu0 0.0
    %292 = vmatprep.subr.mxu0 0.0
    %293 = vmatpush1.msra.mxu0 0.0
    %294 = vmatprep.subr.mxu0 0.0
    %295 = vmatpush1.msra.mxu0 0.0
    %296 = vmatprep.mubr.f32.mxu0 0.0
    %297 = vmatmul.mubr.f32.gmra.mrb[0].mxu0 %v227
    %v298 = vpop.f32.mrb[0].mxu0
    %v299 = vadd.f32 0.0, %v298
    %v300 = vpop.f32.mrb[0].mxu0
    %301 = vmatprep.mubr.f32.mxu0 0.0
    %302 = vmatmul.mubr.f32.gmra.mrb[0].mxu0 %v230
    %v303 = vpop.f32.mrb[0].mxu0
    %v304 = vadd.f32 0.0, %v303
    %v305 = vpop.f32.mrb[0].mxu0
    %306 = vdwg.mxu0
    %v307 = vrcp.pop %v299
    %v308 = vrcp.pop %v304
    %v309 = vmul.f32 %v223, %v307
    %v310 = vmul.f32 %v225, %v308
    %v311 = vmul.f32 %v175, %v24
    %v312 = vmul.f32 %v179, %v25
    %v313 = vmul.f32 %v175, %v26
    %v314 = vmul.f32 %v179, %v27
    %v315 = vmul.f32 %v175, %v28
    %v316 = vmul.f32 %v179, %v29
    %v317 = vmul.f32 %v175, %v30
    %v318 = vmul.f32 %v179, %v31
    %v319 = vpack.c.bf16 %v310, %v309
    %v320 = vpack.c.bf16 %v312, %v311
    %v321 = vpack.c.bf16 %v314, %v313
    %v322 = vpack.c.bf16 %v316, %v315
    %v323 = vpack.c.bf16 %v318, %v317
    %v324 = vld [vmem:[%s2 + $0xa2] sm:$0x1]
    %v325 = vlaneseq
    %v326 = vshrl.u32 %v325, 7
    %v327 = vsub.s32 0, %v326
    %v328 = vrot.slane %v324, %v327
    %v330 = vsel %vm213, %v319, 0
    %332 = vmatprep.subr.bf16.mxu0 0
    %333 = vmatpush1.bf16.msra.mxu0 %v320
    %334 = vmatprep.subr.bf16.mxu0 0
    %335 = vmatpush1.bf16.msra.mxu0 %v321
    %336 = vmatprep.subr.bf16.mxu0 0
    %337 = vmatpush1.bf16.msra.mxu0 %v322
    %338 = vmatprep.subr.bf16.mxu0 0
    %339 = vmatpush1.bf16.msra.mxu0 %v323
    %340 = vmatprep.subr.bf16.mxu0 0
    %341 = vmatpush1.bf16.msra.mxu0 0
    %342 = vmatprep.subr.bf16.mxu0 0
    %343 = vmatpush1.bf16.msra.mxu0 0
    %344 = vmatprep.subr.bf16.mxu0 0
    %345 = vmatpush1.bf16.msra.mxu0 0
    %346 = vmatprep.subr.bf16.mxu0 0
    %347 = vmatpush1.bf16.msra.mxu0 0
    %348 = vmatprep.subr.bf16.mxu0 0
    %349 = vmatpush1.bf16.msra.mxu0 0
    %350 = vmatprep.subr.bf16.mxu0 0
    %351 = vmatpush1.bf16.msra.mxu0 0
    %352 = vmatprep.subr.bf16.mxu0 0
    %353 = vmatpush1.bf16.msra.mxu0 0
    %354 = vmatprep.subr.bf16.mxu0 0
    %355 = vmatpush1.bf16.msra.mxu0 0
    %356 = vmatprep.subr.bf16.mxu0 0
    %357 = vmatpush1.bf16.msra.mxu0 0
    %358 = vmatprep.subr.bf16.mxu0 0
    %359 = vmatpush1.bf16.msra.mxu0 0
    %360 = vmatprep.subr.bf16.mxu0 0
    %361 = vmatpush1.bf16.msra.mxu0 0
    %362 = vmatprep.subr.bf16.mxu0 0
    %363 = vmatpush1.bf16.msra.mxu0 0
    %364 = vmatprep.mubr.bf16.mxu0 0
    %365 = vmatmul.mubr.bf16.gmra.mrb[0].mxu0 %v330
    %v366 = vpop.f32.mrb[0].mxu0
    %v367 = vadd.f32 %v328, %v366
    %v368 = vpop.f32.mrb[0].mxu0
    %v369 = vpop.f32.mrb[0].mxu0
    %v370 = vadd.f32 %v328, %v369
    %v371 = vpop.f32.mrb[0].mxu0
    %372 = vdwg.mxu0
    %v373 = vadd.f32 %v367, %v104
    %v374 = vadd.f32 %v370, %v107
    %v375 = vsel %vm65, %v373, 0.0
    %376 = vadd.xlane.f32.xlu0 %v375
    %v377 = vpop.xlane.xlu0 %376
    %v378 = vsel %vm65, %v374, 0.0
    %379 = vadd.xlane.f32.xlu0 %v378
    %v380 = vpop.xlane.xlu0 %379
    %v381 = vrcp.pop 32.0
    %v382 = vmul.f32 %v377, %v381
    %v383 = vmul.f32 %v380, %v381
    %v384 = vsub.f32 %v373, %v382
    %v385 = vsub.f32 %v374, %v383
    %v386 = vmul.f32 %v384, %v384
    %v387 = vmul.f32 %v385, %v385
    %v388 = vsel %vm65, %v386, 0.0
    %389 = vadd.xlane.f32.xlu0 %v388
    %v390 = vpop.xlane.xlu0 %389
    %v391 = vsel %vm65, %v387, 0.0
    %392 = vadd.xlane.f32.xlu0 %v391
    %v393 = vpop.xlane.xlu0 %392
    %v394 = vmul.f32 %v390, %v381
    %v395 = vmul.f32 %v393, %v381
    %v396 = vadd.f32 %v394, 1e-05
    %v397 = vadd.f32 %v395, 1e-05
    %v398 = vrsqrt.pop %v396
    %v399 = vrsqrt.pop %v397
    %v400 = vmul.f32 %v384, %v398
    %v401 = vmul.f32 %v385, %v399
    %v402 = vld [vmem:[%s2 + $0xa3] sm:$0x1]
    %v403 = vlaneseq
    %v404 = vshrl.u32 %v403, 7
    %v405 = vsub.s32 0, %v404
    %v406 = vrot.slane %v402, %v405
    %v407 = vmul.f32 %v400, %v406
    %v408 = vmul.f32 %v401, %v406
    %v409 = vld [vmem:[%s2 + $0xa4] sm:$0x1]
    %v410 = vlaneseq
    %v411 = vshrl.u32 %v410, 7
    %v412 = vsub.s32 0, %v411
    %v413 = vrot.slane %v409, %v412
    %v414 = vadd.f32 %v407, %v413
    %v415 = vadd.f32 %v408, %v413
    %v416 = vld [vmem:[%s1 + $0x20] sm:$0xff]
    %v417 = vld [vmem:[%s1 + $0x28] sm:$0xff]
    %v418 = vld [vmem:[%s1 + $0x30] sm:$0xff]
    %v419 = vld [vmem:[%s1 + $0x38] sm:$0xff]
    %v420 = vpack.c.bf16 %v415, %v414
    %v425 = vunpack.c.l.b16 %v416
    %v426 = vunpack.c.h.b16 %v416
    %v427 = vunpack.c.l.b16 %v417
    %v428 = vunpack.c.h.b16 %v417
    %v429 = vunpack.c.l.b16 %v418
    %v430 = vunpack.c.h.b16 %v418
    %v431 = vunpack.c.l.b16 %v419
    %v432 = vunpack.c.h.b16 %v419
    %v433 = vpack.c.b16 %v427, %v425
    %v434 = vpack.c.b16 %v428, %v426
    %v435 = vpack.c.b16 %v431, %v429
    %v436 = vpack.c.b16 %v432, %v430
    %v442 = vsel %vm65, %v420, 0
    %444 = vmatprep.subr.bf16.mxu0 %v434
    %445 = vmatpush1.bf16.msra.mxu0 %v433
    %446 = vmatprep.subr.bf16.mxu0 %v436
    %447 = vmatpush1.bf16.msra.mxu0 %v435
    %448 = vmatprep.subr.bf16.mxu0 0
    %449 = vmatpush1.bf16.msra.mxu0 0
    %450 = vmatprep.subr.bf16.mxu0 0
    %451 = vmatpush1.bf16.msra.mxu0 0
    %452 = vmatprep.subr.bf16.mxu0 0
    %453 = vmatpush1.bf16.msra.mxu0 0
    %454 = vmatprep.subr.bf16.mxu0 0
    %455 = vmatpush1.bf16.msra.mxu0 0
    %456 = vmatprep.subr.bf16.mxu0 0
    %457 = vmatpush1.bf16.msra.mxu0 0
    %458 = vmatprep.subr.bf16.mxu0 0
    %459 = vmatpush1.bf16.msra.mxu0 0
    %460 = vmatprep.subr.bf16.mxu0 0
    %461 = vmatpush1.bf16.msra.mxu0 0
    %462 = vmatprep.subr.bf16.mxu0 0
    %463 = vmatpush1.bf16.msra.mxu0 0
    %464 = vmatprep.subr.bf16.mxu0 0
    %465 = vmatpush1.bf16.msra.mxu0 0
    %466 = vmatprep.subr.bf16.mxu0 0
    %467 = vmatpush1.bf16.msra.mxu0 0
    %468 = vmatprep.subr.bf16.mxu0 0
    %469 = vmatpush1.bf16.msra.mxu0 0
    %470 = vmatprep.subr.bf16.mxu0 0
    %471 = vmatpush1.bf16.msra.mxu0 0
    %472 = vmatprep.subr.bf16.mxu0 0
    %473 = vmatpush1.bf16.msra.mxu0 0
    %474 = vmatprep.subr.bf16.mxu0 0
    %475 = vmatpush1.bf16.msra.mxu0 0
    %476 = vmatprep.mubr.bf16.mxu0 0
    %477 = vmatmul.mubr.bf16.gmra.mrb[0].mxu0 %v442
    %v478 = vpop.f32.mrb[0].mxu0
    %v479 = vadd.f32 0.0, %v478
    %v480 = vpop.f32.mrb[0].mxu0
    %v481 = vadd.f32 0.0, %v480
    %v482 = vpop.f32.mrb[0].mxu0
    %v483 = vadd.f32 0.0, %v482
    %v484 = vpop.f32.mrb[0].mxu0
    %v485 = vadd.f32 0.0, %v484
    %486 = vdwg.mxu0
    %v487 = vmul.f32 %v479, %v184
    %v488 = vmul.f32 %v483, %v186
    %v489 = vsel %vm191, %v487, 0.0
    %v490 = vsel %vm191, %v488, 0.0
    %v491 = vadd.f32 %v489, %v490
    %v492 = vrot.slane %v491, 4
    %v493 = vadd.f32 %v491, %v492
    %v494 = vrot.slane %v493, 2
    %v495 = vadd.f32 %v493, %v494
    %v496 = vrot.slane %v495, 1
    %v497 = vadd.f32 %v495, %v496
    %499 = vrot.lane.b32.xlu0 %v497, 64
    %v500 = vpop.permute.xlu0 %499
    %v502 = vadd.f32 %v479, %v500
    %v503 = vadd.f32 %v483, %v500
    %v504 = vmul.f32 %v502, 0.2
    %v505 = vmul.f32 %v503, 0.2
    %v506 = vmax.f32 %v502, %v504
    %v507 = vmax.f32 %v503, %v505
    %v508 = vadd.f32 %v506, %v34
    %v509 = vadd.f32 %v507, %v35
    %v510 = vsel %vm213, %v508, -inf
    %511 = vmax.xlane.f32.xlu0 %v510
    %v512 = vpop.xlane.xlu0 %511
    %v513 = vsel %vm213, %v509, -inf
    %514 = vmax.xlane.f32.xlu0 %v513
    %v515 = vpop.xlane.xlu0 %514
    %v516 = vsub.f32 %v508, %v512
    %v517 = vsub.f32 %v509, %v515
    %v518 = vmul.f32 %v516, 1.442695
    %v519 = vpow.pop %v518
    %v520 = vmul.f32 %v517, 1.442695
    %v521 = vpow.pop %v520
    %v523 = vsel %vm213, %v519, 0
    %v526 = vsel %vm213, %v521, 0
    %528 = vmatprep.subr.mxu0 0.0
    %529 = vmatpush1.msra.mxu0 %v16
    %530 = vmatprep.subr.mxu0 0.0
    %531 = vmatpush1.msra.mxu0 %v17
    %532 = vmatprep.subr.mxu0 0.0
    %533 = vmatpush1.msra.mxu0 %v18
    %534 = vmatprep.subr.mxu0 0.0
    %535 = vmatpush1.msra.mxu0 %v19
    %536 = vmatprep.subr.mxu0 0.0
    %537 = vmatpush1.msra.mxu0 %v20
    %538 = vmatprep.subr.mxu0 0.0
    %539 = vmatpush1.msra.mxu0 %v21
    %540 = vmatprep.subr.mxu0 0.0
    %541 = vmatpush1.msra.mxu0 %v22
    %542 = vmatprep.subr.mxu0 0.0
    %543 = vmatpush1.msra.mxu0 %v23
    %544 = vmatprep.subr.mxu0 0.0
    %545 = vmatpush1.msra.mxu0 0.0
    %546 = vmatprep.subr.mxu0 0.0
    %547 = vmatpush1.msra.mxu0 0.0
    %548 = vmatprep.subr.mxu0 0.0
    %549 = vmatpush1.msra.mxu0 0.0
    %550 = vmatprep.subr.mxu0 0.0
    %551 = vmatpush1.msra.mxu0 0.0
    %552 = vmatprep.subr.mxu0 0.0
    %553 = vmatpush1.msra.mxu0 0.0
    %554 = vmatprep.subr.mxu0 0.0
    %555 = vmatpush1.msra.mxu0 0.0
    %556 = vmatprep.subr.mxu0 0.0
    %557 = vmatpush1.msra.mxu0 0.0
    %558 = vmatprep.subr.mxu0 0.0
    %559 = vmatpush1.msra.mxu0 0.0
    %560 = vmatprep.subr.mxu0 0.0
    %561 = vmatpush1.msra.mxu0 0.0
    %562 = vmatprep.subr.mxu0 0.0
    %563 = vmatpush1.msra.mxu0 0.0
    %564 = vmatprep.subr.mxu0 0.0
    %565 = vmatpush1.msra.mxu0 0.0
    %566 = vmatprep.subr.mxu0 0.0
    %567 = vmatpush1.msra.mxu0 0.0
    %568 = vmatprep.subr.mxu0 0.0
    %569 = vmatpush1.msra.mxu0 0.0
    %570 = vmatprep.subr.mxu0 0.0
    %571 = vmatpush1.msra.mxu0 0.0
    %572 = vmatprep.subr.mxu0 0.0
    %573 = vmatpush1.msra.mxu0 0.0
    %574 = vmatprep.subr.mxu0 0.0
    %575 = vmatpush1.msra.mxu0 0.0
    %576 = vmatprep.subr.mxu0 0.0
    %577 = vmatpush1.msra.mxu0 0.0
    %578 = vmatprep.subr.mxu0 0.0
    %579 = vmatpush1.msra.mxu0 0.0
    %580 = vmatprep.subr.mxu0 0.0
    %581 = vmatpush1.msra.mxu0 0.0
    %582 = vmatprep.subr.mxu0 0.0
    %583 = vmatpush1.msra.mxu0 0.0
    %584 = vmatprep.subr.mxu0 0.0
    %585 = vmatpush1.msra.mxu0 0.0
    %586 = vmatprep.subr.mxu0 0.0
    %587 = vmatpush1.msra.mxu0 0.0
    %588 = vmatprep.subr.mxu0 0.0
    %589 = vmatpush1.msra.mxu0 0.0
    %590 = vmatprep.subr.mxu0 0.0
    %591 = vmatpush1.msra.mxu0 0.0
    %592 = vmatprep.mubr.f32.mxu0 0.0
    %593 = vmatmul.mubr.f32.gmra.mrb[0].mxu0 %v523
    %v594 = vpop.f32.mrb[0].mxu0
    %v595 = vadd.f32 0.0, %v594
    %v596 = vpop.f32.mrb[0].mxu0
    %597 = vmatprep.mubr.f32.mxu0 0.0
    %598 = vmatmul.mubr.f32.gmra.mrb[0].mxu0 %v526
    %v599 = vpop.f32.mrb[0].mxu0
    %v600 = vadd.f32 0.0, %v599
    %v601 = vpop.f32.mrb[0].mxu0
    %602 = vdwg.mxu0
    %v603 = vrcp.pop %v595
    %v604 = vrcp.pop %v600
    %v605 = vmul.f32 %v519, %v603
    %v606 = vmul.f32 %v521, %v604
    %v607 = vmul.f32 %v481, %v24
    %v608 = vmul.f32 %v485, %v25
    %v609 = vmul.f32 %v481, %v26
    %v610 = vmul.f32 %v485, %v27
    %v611 = vmul.f32 %v481, %v28
    %v612 = vmul.f32 %v485, %v29
    %v613 = vmul.f32 %v481, %v30
    %v614 = vmul.f32 %v485, %v31
    %v615 = vpack.c.bf16 %v606, %v605
    %v616 = vpack.c.bf16 %v608, %v607
    %v617 = vpack.c.bf16 %v610, %v609
    %v618 = vpack.c.bf16 %v612, %v611
    %v619 = vpack.c.bf16 %v614, %v613
    %v620 = vld [vmem:[%s2 + $0xa5] sm:$0x1]
    %v621 = vlaneseq
    %v622 = vshrl.u32 %v621, 7
    %v623 = vsub.s32 0, %v622
    %v624 = vrot.slane %v620, %v623
    %v626 = vsel %vm213, %v615, 0
    %628 = vmatprep.subr.bf16.mxu0 0
    %629 = vmatpush1.bf16.msra.mxu0 %v616
    %630 = vmatprep.subr.bf16.mxu0 0
    %631 = vmatpush1.bf16.msra.mxu0 %v617
    %632 = vmatprep.subr.bf16.mxu0 0
    %633 = vmatpush1.bf16.msra.mxu0 %v618
    %634 = vmatprep.subr.bf16.mxu0 0
    %635 = vmatpush1.bf16.msra.mxu0 %v619
    %636 = vmatprep.subr.bf16.mxu0 0
    %637 = vmatpush1.bf16.msra.mxu0 0
    %638 = vmatprep.subr.bf16.mxu0 0
    %639 = vmatpush1.bf16.msra.mxu0 0
    %640 = vmatprep.subr.bf16.mxu0 0
    %641 = vmatpush1.bf16.msra.mxu0 0
    %642 = vmatprep.subr.bf16.mxu0 0
    %643 = vmatpush1.bf16.msra.mxu0 0
    %644 = vmatprep.subr.bf16.mxu0 0
    %645 = vmatpush1.bf16.msra.mxu0 0
    %646 = vmatprep.subr.bf16.mxu0 0
    %647 = vmatpush1.bf16.msra.mxu0 0
    %648 = vmatprep.subr.bf16.mxu0 0
    %649 = vmatpush1.bf16.msra.mxu0 0
    %650 = vmatprep.subr.bf16.mxu0 0
    %651 = vmatpush1.bf16.msra.mxu0 0
    %652 = vmatprep.subr.bf16.mxu0 0
    %653 = vmatpush1.bf16.msra.mxu0 0
    %654 = vmatprep.subr.bf16.mxu0 0
    %655 = vmatpush1.bf16.msra.mxu0 0
    %656 = vmatprep.subr.bf16.mxu0 0
    %657 = vmatpush1.bf16.msra.mxu0 0
    %658 = vmatprep.subr.bf16.mxu0 0
    %659 = vmatpush1.bf16.msra.mxu0 0
    %660 = vmatprep.mubr.bf16.mxu0 0
    %661 = vmatmul.mubr.bf16.gmra.mrb[0].mxu0 %v626
    %v662 = vpop.f32.mrb[0].mxu0
    %v663 = vadd.f32 %v624, %v662
    %v664 = vpop.f32.mrb[0].mxu0
    %v665 = vpop.f32.mrb[0].mxu0
    %v666 = vadd.f32 %v624, %v665
    %v667 = vpop.f32.mrb[0].mxu0
    %668 = vdwg.mxu0
    %v669 = vadd.f32 %v663, %v414
    %v670 = vadd.f32 %v666, %v415
    %v671 = vsel %vm65, %v669, 0.0
    %672 = vadd.xlane.f32.xlu0 %v671
    %v673 = vpop.xlane.xlu0 %672
    %v674 = vsel %vm65, %v670, 0.0
    %675 = vadd.xlane.f32.xlu0 %v674
    %v676 = vpop.xlane.xlu0 %675
    %v677 = vmul.f32 %v673, %v381
    %v678 = vmul.f32 %v676, %v381
    %v679 = vsub.f32 %v669, %v677
    %v680 = vsub.f32 %v670, %v678
    %v681 = vmul.f32 %v679, %v679
    %v682 = vmul.f32 %v680, %v680
    %v683 = vsel %vm65, %v681, 0.0
    %684 = vadd.xlane.f32.xlu0 %v683
    %v685 = vpop.xlane.xlu0 %684
    %v686 = vsel %vm65, %v682, 0.0
    %687 = vadd.xlane.f32.xlu0 %v686
    %v688 = vpop.xlane.xlu0 %687
    %v689 = vmul.f32 %v685, %v381
    %v690 = vmul.f32 %v688, %v381
    %v691 = vadd.f32 %v689, 1e-05
    %v692 = vadd.f32 %v690, 1e-05
    %v693 = vrsqrt.pop %v691
    %v694 = vrsqrt.pop %v692
    %v695 = vmul.f32 %v679, %v693
    %v696 = vmul.f32 %v680, %v694
    %v697 = vld [vmem:[%s2 + $0xa6] sm:$0x1]
    %v698 = vlaneseq
    %v699 = vshrl.u32 %v698, 7
    %v700 = vsub.s32 0, %v699
    %v701 = vrot.slane %v697, %v700
    %v702 = vmul.f32 %v695, %v701
    %v703 = vmul.f32 %v696, %v701
    %v704 = vld [vmem:[%s2 + $0xa7] sm:$0x1]
    %v705 = vlaneseq
    %v706 = vshrl.u32 %v705, 7
    %v707 = vsub.s32 0, %v706
    %v708 = vrot.slane %v704, %v707
    %v709 = vadd.f32 %v702, %v708
    %v710 = vadd.f32 %v703, %v708
    %v711 = vsel %vm65, %v709, 0.0
    %v712 = vsel %vm65, %v710, 0.0
    %v713 = vadd.f32 %v711, %v712
    %v714 = vrot.slane %v713, 4
    %v715 = vadd.f32 %v713, %v714
    %v716 = vrot.slane %v715, 2
    %v717 = vadd.f32 %v715, %v716
    %v718 = vrot.slane %v717, 1
    %v719 = vadd.f32 %v717, %v718
    %v720 = vrcp.pop 16.0
    %v721 = vmul.f32 %v719, %v720
    %v722 = vpack.c.bf16 %v721, %v721
    %v727 = vunpack.c.l.b16 %v42
    %v728 = vunpack.c.l.b16 %v43
    %v729 = vunpack.c.l.b16 %v44
    %v730 = vunpack.c.l.b16 %v45
    %v731 = vpack.c.b16 %v728, %v727
    %v732 = vpack.c.b16 %v730, %v729
    %v736 = vsel %vm65, %v722, 0
    %738 = vmatprep.subr.bf16.mxu0 0
    %739 = vmatpush1.bf16.msra.mxu0 %v731
    %740 = vmatprep.subr.bf16.mxu0 0
    %741 = vmatpush1.bf16.msra.mxu0 %v732
    %742 = vmatprep.subr.bf16.mxu0 0
    %743 = vmatpush1.bf16.msra.mxu0 0
    %744 = vmatprep.subr.bf16.mxu0 0
    %745 = vmatpush1.bf16.msra.mxu0 0
    %746 = vmatprep.subr.bf16.mxu0 0
    %747 = vmatpush1.bf16.msra.mxu0 0
    %748 = vmatprep.subr.bf16.mxu0 0
    %749 = vmatpush1.bf16.msra.mxu0 0
    %750 = vmatprep.subr.bf16.mxu0 0
    %751 = vmatpush1.bf16.msra.mxu0 0
    %752 = vmatprep.subr.bf16.mxu0 0
    %753 = vmatpush1.bf16.msra.mxu0 0
    %754 = vmatprep.subr.bf16.mxu0 0
    %755 = vmatpush1.bf16.msra.mxu0 0
    %756 = vmatprep.subr.bf16.mxu0 0
    %757 = vmatpush1.bf16.msra.mxu0 0
    %758 = vmatprep.subr.bf16.mxu0 0
    %759 = vmatpush1.bf16.msra.mxu0 0
    %760 = vmatprep.subr.bf16.mxu0 0
    %761 = vmatpush1.bf16.msra.mxu0 0
    %762 = vmatprep.subr.bf16.mxu0 0
    %763 = vmatpush1.bf16.msra.mxu0 0
    %764 = vmatprep.subr.bf16.mxu0 0
    %765 = vmatpush1.bf16.msra.mxu0 0
    %766 = vmatprep.subr.bf16.mxu0 0
    %767 = vmatpush1.bf16.msra.mxu0 0
    %768 = vmatprep.subr.bf16.mxu0 0
    %769 = vmatpush1.bf16.msra.mxu0 0
    %770 = vmatprep.mubr.bf16.mxu0 0
    %771 = vmatmul.mubr.bf16.gmra.mrb[0].mxu0 %v736
    %v772 = vpop.f32.mrb[0].mxu0
    %v773 = vadd.f32 %v37, %v772
    %v774 = vpop.f32.mrb[0].mxu0
    %v775 = vpop.f32.mrb[0].mxu0
    %v776 = vpop.f32.mrb[0].mxu0
    %777 = vdwg.mxu0
    %vm778 = vcmask 253952
    %779 = vst.msk [vmem:[#allocation2] sm:$0x1] %vm778, %v773
    // Predicated region
    $region14: #{graph_encoder_forward.1} parent=1 // pred_check
      _
    $region15: #{graph_encoder_forward.1} parent=1 // pred_check_branch
      %781 = sbr.rel (0) target = $region17
    $region16: #{graph_encoder_forward.1} parent=1 // pred_region
      %s783 = ssub.s32 16, 16
      %784 = vsyncadd [#allocation3], %s783
      %s786 = sshll.u32 [#allocation2], 4
      %s787 = int_to_ptr.vmem [resolvable:$true] %s786
      %789 = dma.vmem_to_hbm [thread:$0]  %s787, 16, %s3, [#allocation3]
    $region17: #{graph_encoder_forward.1} parent=1 // pred_fallthru
      _
    // Predicated region
    $region18: #{graph_encoder_forward.1} parent=1 // pred_check
      _
    $region19: #{graph_encoder_forward.1} parent=1 // pred_check_branch
      %791 = sbr.rel (0) target = $region21
    $region20: #{graph_encoder_forward.1} parent=1 // pred_region
      %792 = dma.done [#allocation3], 16
    $region21: #{graph_encoder_forward.1} parent=1 // pred_fallthru
      _
    %793 = vsyncpa [#allocation3], 1

</llo_original>
